<compile_context>
chip_gen: v7x
topology: tpu7x:2x2x1
jax: 0.10.0
libtpu: 0.0.40
codegen_flags: <defaults>
</compile_context>

<pallas_src>
import jax
import jax.numpy as jnp
from jax.experimental import pallas as pl
from jax.experimental.pallas import tpu as pltpu

KERNEL = 3
PAD = KERNEL // 2          # = 1 (geo-pad / circulant weight below assume PAD == 1)
LN_EPS = 1e-5


# ----------------------------------------------------------------------------
# Host-side parameter prep
# ----------------------------------------------------------------------------
def _block_circulant_weight(w, W):
    """(KH, KW, Cin, Cout) HWIO conv weight -> (KH, W*Cin, W*Cout) circulant.

    mat[kh, p*Cin+ci, q*Cout+co] = w[kh, kw, ci, co] where p == (q+kw-PAD) mod W,
    so the circular (longitude-wrapped) 3x3 conv becomes, per output row h,
        out[h] = sum_kh slab[h+kh] @ mat[kh]
    with no halo columns, no in-kernel im2col reshapes, and K = W*Cin exactly.
    """
    KH, KW, Cin, Cout = w.shape
    p = jnp.arange(W)[None, :, None]
    q = jnp.arange(W)[None, None, :]
    kw = jnp.arange(KW)[:, None, None]
    ind = ((p - (q + kw - PAD)) % W == 0).astype(w.dtype)        # (KW, W, W)
    mat = jnp.einsum("kpq,hkio->hpiqo", ind, w)                  # (KH,W,Cin,W,Cout)
    return mat.reshape(KH, W * Cin, W * Cout)


# ----------------------------------------------------------------------------
# Fused kernel (one grid step = one batch sample)
# ----------------------------------------------------------------------------
def _make_fused_kernel(H, W, C):
    assert KERNEL == 3 and PAD == 1, "geo-pad / circulant weight assume a 3x3 kernel"
    assert W % 2 == 0, "half-revolution pole shift needs an even longitude count"
    WC = W * C
    SH = (W // 2) * C              # half-revolution shift, in lanes (multiple of C)

    def write_geo_padded(src, pad_ref):
        """src: (H, WC) f32 value -> geo-padded slab in pad_ref (H+2, WC).

        Longitude wrap is folded into the circulant weight, so only the two
        pole rows are added: the pole row itself shifted by half a revolution
        (lane roll by SH; W even => +SH and -SH are identical mod WC)."""
        rolled = pltpu.roll(src, shift=SH, axis=1)           # XLU lane rotation
        pad_ref[0:1, :] = rolled[0:1, :]
        pad_ref[PAD:PAD + H, :] = src
        pad_ref[PAD + H:PAD + H + 1, :] = rolled[H - 1:H, :]

    def conv3x3(pad_ref, w_ref, b_ref):
        """Circular 3x3 conv as KERNEL bf16 MXU dots with f32 accumulation."""
        acc = jnp.dot(pad_ref[0:H, :].astype(jnp.bfloat16), w_ref[0],
                      preferred_element_type=jnp.float32)
        for kh in range(1, KERNEL):
            acc += jnp.dot(pad_ref[kh:kh + H, :].astype(jnp.bfloat16), w_ref[kh],
                           preferred_element_type=jnp.float32)
        return acc + b_ref[...]                              # (H, WC) f32

    def kernel(dt_ref, x_ref, w1_ref, b1_ref, lnw_ref, lnb_ref, w2_ref, b2_ref,
               out_ref, pad_ref):
        xf = x_ref[0]                                        # (H, WC) f32

        # ---- conv1 on the geo-padded input -------------------------------
        write_geo_padded(xf, pad_ref)
        c1 = conv3x3(pad_ref, w1_ref, b1_ref)

        # ---- LayerNorm([C,H,W]) per sample, two-pass f32 statistics ------
        inv_n = 1.0 / float(H * W * C)
        mu = jnp.sum(c1, axis=(0, 1), keepdims=True) * inv_n
        d = c1 - mu
        var = jnp.sum(d * d, axis=(0, 1), keepdims=True) * inv_n
        y = d * jax.lax.rsqrt(var + LN_EPS) * lnw_ref[...] + lnb_ref[...]
        y = y * jax.nn.sigmoid(y)                            # SiLU

        # ---- conv2 on the geo-padded intermediate (reuse scratch) --------
        write_geo_padded(y, pad_ref)
        c2 = conv3x3(pad_ref, w2_ref, b2_ref)
        z = c2 * jax.nn.sigmoid(c2)                          # SiLU

        # ---- residual dt-update, lane-dense 128-wide store ----------------
        out_ref[0] = (xf + dt_ref[0] * z).astype(out_ref.dtype)

    return kernel


# ----------------------------------------------------------------------------
# Wrappers
# ----------------------------------------------------------------------------
def forcings_integrator_nhwc(x_nhwc, dt, params):
    """x_nhwc: (B, H, W, C).  Returns (B, H, W, C) float32."""
    w1, b1, lnw, lnb, w2, b2 = params
    B, H, W, C = x_nhwc.shape
    WC = W * C
    assert WC % 128 == 0, "lane-dense layout assumes W*C is a multiple of 128"

    xf = x_nhwc.astype(jnp.float32).reshape(B, H, WC)
    # Circulant conv weights, stored bf16 (MXU-native; half the weight DMA bytes).
    w1t = _block_circulant_weight(w1.astype(jnp.float32), W).astype(jnp.bfloat16)
    w2t = _block_circulant_weight(w2.astype(jnp.float32), W).astype(jnp.bfloat16)
    b1f = jnp.tile(b1.reshape(-1).astype(jnp.float32), W).reshape(1, WC)
    b2f = jnp.tile(b2.reshape(-1).astype(jnp.float32), W).reshape(1, WC)
    # PyTorch LayerNorm([C,H,W]) params are (C, H, W) -> lane-dense (H, W*C).
    lnwf = jnp.transpose(lnw.astype(jnp.float32), (1, 2, 0)).reshape(H, WC)
    lnbf = jnp.transpose(lnb.astype(jnp.float32), (1, 2, 0)).reshape(H, WC)
    dt_arr = jnp.asarray([dt], jnp.float32)

    flops = 2 * B * (2 * H * WC * KERNEL * WC)                 # two convs of MXU dots
    transcendentals = 2 * B * H * WC                           # two SiLUs
    bytes_accessed = (2 * B * H * WC * 4                       # x in + out (f32)
                      + 2 * KERNEL * WC * WC * 2               # two bf16 circulant weights
                      + 2 * H * WC * 4 + 2 * WC * 4)           # LN params + biases

    out = pl.pallas_call(
        _make_fused_kernel(H, W, C),
        out_shape=jax.ShapeDtypeStruct((B, H, WC), jnp.float32),
        grid=(B,),
        in_specs=[
            pl.BlockSpec(memory_space=pltpu.MemorySpace.SMEM),       # dt (1,)
            pl.BlockSpec((1, H, WC), lambda b: (b, 0, 0)),           # x
            pl.BlockSpec((KERNEL, WC, WC), lambda b: (0, 0, 0)),     # w1 circulant (bf16)
            pl.BlockSpec((1, WC), lambda b: (0, 0)),                 # b1 lane-tiled
            pl.BlockSpec((H, WC), lambda b: (0, 0)),                 # LN weight
            pl.BlockSpec((H, WC), lambda b: (0, 0)),                 # LN bias
            pl.BlockSpec((KERNEL, WC, WC), lambda b: (0, 0, 0)),     # w2 circulant (bf16)
            pl.BlockSpec((1, WC), lambda b: (0, 0)),                 # b2 lane-tiled
        ],
        out_specs=pl.BlockSpec((1, H, WC), lambda b: (b, 0, 0)),
        scratch_shapes=[pltpu.VMEM((H + 2 * PAD, WC), jnp.float32)],  # geo-pad slab
        compiler_params=pltpu.CompilerParams(
            dimension_semantics=("parallel",)),    # batch axis -> both TensorCores
        cost_estimate=pl.CostEstimate(flops=flops,
                                      transcendentals=transcendentals,
                                      bytes_accessed=bytes_accessed),
    )(dt_arr, xf, w1t, b1f, lnwf, lnbf, w2t, b2f)

    return out.reshape(B, H, W, C)


def forcings_integrator(x_nchw, dt, params):
    """PyTorch-parity wrapper: (B, C, H, W) -> (B, C, H, W)."""
    # TODO(synk): keep the surrounding model NHWC end-to-end so these two
    # transposes (full HBM round trips at production sizes) disappear.
    x = jnp.transpose(x_nchw, (0, 2, 3, 1))
    out = forcings_integrator_nhwc(x, dt, params)
    return jnp.transpose(out, (0, 3, 1, 2))


# ----------------------------------------------------------------------------
# Pure-JAX (f32) reference for validation
# ----------------------------------------------------------------------------
def geo_cyclic_pad(x, pad=PAD):
    # TODO(synk): GeoCyclicPadding source was not provided; this is circular
    # longitude padding plus pole rows (the pole row itself for pad=1) shifted
    # by half a revolution, with the shift applied on the unpadded width.
    B, H, W, C = x.shape
    top = jnp.roll(jnp.flip(x[:, :pad], axis=1), W // 2, axis=2)
    bot = jnp.roll(jnp.flip(x[:, H - pad:], axis=1), W // 2, axis=2)
    xv = jnp.concatenate([top, x, bot], axis=1)
    return jnp.concatenate([xv[:, :, W - pad:], xv, xv[:, :, :pad]], axis=2)


def reference(x_nchw, dt, params):
    w1, b1, lnw, lnb, w2, b2 = params
    x = jnp.transpose(x_nchw, (0, 2, 3, 1)).astype(jnp.float32)
    dn = ("NHWC", "HWIO", "NHWC")

    xpad = geo_cyclic_pad(x)
    c1 = jax.lax.conv_general_dilated(xpad, w1, (1, 1), "VALID",
                                      dimension_numbers=dn) + b1.reshape(1, 1, 1, -1)
    mu = jnp.mean(c1, axis=(1, 2, 3), keepdims=True)
    var = jnp.mean((c1 - mu) ** 2, axis=(1, 2, 3), keepdims=True)
    g = jnp.transpose(lnw, (1, 2, 0))[None]        # PyTorch (C,H,W) -> (1,H,W,C)
    b = jnp.transpose(lnb, (1, 2, 0))[None]
    y = (c1 - mu) * jax.lax.rsqrt(var + LN_EPS) * g + b
    y = y * jax.nn.sigmoid(y)

    ypad = geo_cyclic_pad(y)
    c2 = jax.lax.conv_general_dilated(ypad, w2, (1, 1), "VALID",
                                      dimension_numbers=dn) + b2.reshape(1, 1, 1, -1)
    z = c2 * jax.nn.sigmoid(c2)
    out = x + dt * z
    return jnp.transpose(out, (0, 3, 1, 2))


# ----------------------------------------------------------------------------
def make_params(key, C, H, W):
    """PyTorch-shaped parameters: conv weights HWIO, biases (C,), LayerNorm
    weight/bias (C, H, W).  LN params are randomized (PyTorch default init is
    ones/zeros) so the (C,H,W) -> (H,W*C) permutation is actually exercised."""
    k1, k2, k3, k4, k5, k6 = jax.random.split(key, 6)
    fan_in = C * KERNEL * KERNEL
    bound = 1.0 / (fan_in ** 0.5)
    w1 = jax.random.uniform(k1, (KERNEL, KERNEL, C, C), jnp.float32, -bound, bound)
    b1 = jax.random.uniform(k2, (C,), jnp.float32, -bound, bound)
    w2 = jax.random.uniform(k3, (KERNEL, KERNEL, C, C), jnp.float32, -bound, bound)
    b2 = jax.random.uniform(k4, (C,), jnp.float32, -bound, bound)
    lnw = 1.0 + 0.1 * jax.random.normal(k5, (C, H, W), jnp.float32)
    lnb = 0.1 * jax.random.normal(k6, (C, H, W), jnp.float32)
    return (w1, b1, lnw, lnb, w2, b2)


if __name__ == "__main__":
    B, C, H, W = 2, 8, 8, 16        # batch, hidden_dim, mesh_size=(8, 16); W*C = 128
    dt = 0.1

    key = jax.random.PRNGKey(0)
    kx, kp = jax.random.split(key)
    hidden_features = jax.random.normal(kx, (B, C, H, W), jnp.float32)
    params = make_params(kp, C, H, W)

    out = jax.block_until_ready(forcings_integrator(hidden_features, dt, params))
    ref = jax.block_until_ready(reference(hidden_features, dt, params))

    assert out.shape == hidden_features.shape
    err = float(jnp.max(jnp.abs(out - ref)))
    # Kernel uses bf16 MXU operands vs the f32 reference; the dt=0.1 residual
    # scaling keeps the end-to-end difference at the ~1e-3 level.
    assert jnp.allclose(out, ref, rtol=2e-2, atol=2e-2), f"max abs err={err}"
    print("KERNEL_OK")
</pallas_src>

<mosaic_0001>
module attributes {stable_mosaic.version = 11 : i64} {
  func.func @kernel(%arg0: i32, %arg1: memref<1xf32, #tpu.memory_space<smem>>, %arg2: memref<1x8x128xf32, #tpu.memory_space<vmem>>, %arg3: memref<3x128x128xbf16, #tpu.memory_space<vmem>>, %arg4: memref<1x128xf32, #tpu.memory_space<vmem>>, %arg5: memref<8x128xf32, #tpu.memory_space<vmem>>, %arg6: memref<8x128xf32, #tpu.memory_space<vmem>>, %arg7: memref<3x128x128xbf16, #tpu.memory_space<vmem>>, %arg8: memref<1x128xf32, #tpu.memory_space<vmem>>, %arg9: memref<1x8x128xf32, #tpu.memory_space<vmem>>, %arg10: memref<10x128xf32, #tpu.memory_space<vmem>>) attributes {dimension_semantics = [#tpu.dimension_semantics<parallel>], iteration_bounds = array<i64: 2>, scalar_prefetch = 0 : i64, scratch_operands = 1 : i64, tpu.core_type = #tpu.core_type<tc>, window_params = [{transform_indices = @transform_0, window_bounds = array<i64: 1>}, {transform_indices = @transform_1, window_bounds = array<i64: 1, 8, 128>}, {pipeline_mode = #tpu.pipeline_mode<synchronous>, transform_indices = @transform_2, window_bounds = array<i64: 3, 128, 128>}, {pipeline_mode = #tpu.pipeline_mode<synchronous>, transform_indices = @transform_3, window_bounds = array<i64: 1, 128>}, {pipeline_mode = #tpu.pipeline_mode<synchronous>, transform_indices = @transform_4, window_bounds = array<i64: 8, 128>}, {pipeline_mode = #tpu.pipeline_mode<synchronous>, transform_indices = @transform_5, window_bounds = array<i64: 8, 128>}, {pipeline_mode = #tpu.pipeline_mode<synchronous>, transform_indices = @transform_6, window_bounds = array<i64: 3, 128, 128>}, {pipeline_mode = #tpu.pipeline_mode<synchronous>, transform_indices = @transform_7, window_bounds = array<i64: 1, 128>}, {transform_indices = @transform_8, window_bounds = array<i64: 1, 8, 128>}]} {
    %c0 = arith.constant 0 : index
    %c0_0 = arith.constant 0 : index
    %c0_1 = arith.constant 0 : index
    %0 = vector.load %arg2[%c0, %c0_0, %c0_1] : memref<1x8x128xf32, #tpu.memory_space<vmem>>, vector<1x8x128xf32>
    %1 = vector.shape_cast %0 : vector<1x8x128xf32> to vector<8x128xf32>
    %c64_i32 = arith.constant 64 : i32
    %2 = tpu.dynamic_rotate %1 by %c64_i32 dim 1 : vector<8x128xf32>, i32 -> vector<8x128xf32>
    %3 = vector.extract_strided_slice %2 {offsets = [0, 0], sizes = [1, 128], strides = [1, 1]} : vector<8x128xf32> to vector<1x128xf32>
    %c0_2 = arith.constant 0 : index
    %c0_3 = arith.constant 0 : index
    %4 = vector.load %arg10[%c0_2, %c0_3] : memref<10x128xf32, #tpu.memory_space<vmem>>, vector<1x128xf32>
    tpu.vector_store %arg10[%c0_2, %c0_3], %3 {strides = array<i32>} : memref<10x128xf32, #tpu.memory_space<vmem>>, vector<1x128xf32>,
    %c1 = arith.constant 1 : index
    %c0_4 = arith.constant 0 : index
    %5 = vector.load %arg10[%c1, %c0_4] : memref<10x128xf32, #tpu.memory_space<vmem>>, vector<8x128xf32>
    tpu.vector_store %arg10[%c1, %c0_4], %1 {strides = array<i32>} : memref<10x128xf32, #tpu.memory_space<vmem>>, vector<8x128xf32>,
    %6 = vector.extract_strided_slice %2 {offsets = [7, 0], sizes = [1, 128], strides = [1, 1]} : vector<8x128xf32> to vector<1x128xf32>
    %c9 = arith.constant 9 : index
    %c0_5 = arith.constant 0 : index
    %7 = vector.load %arg10[%c9, %c0_5] : memref<10x128xf32, #tpu.memory_space<vmem>>, vector<1x128xf32>
    tpu.vector_store %arg10[%c9, %c0_5], %6 {strides = array<i32>} : memref<10x128xf32, #tpu.memory_space<vmem>>, vector<1x128xf32>,
    %c0_6 = arith.constant 0 : index
    %c0_7 = arith.constant 0 : index
    %8 = vector.load %arg10[%c0_6, %c0_7] : memref<10x128xf32, #tpu.memory_space<vmem>>, vector<8x128xf32>
    %9 = arith.truncf %8 : vector<8x128xf32> to vector<8x128xbf16>
    %c0_8 = arith.constant 0 : index
    %c0_9 = arith.constant 0 : index
    %c0_10 = arith.constant 0 : index
    %10 = vector.load %arg3[%c0_8, %c0_9, %c0_10] : memref<3x128x128xbf16, #tpu.memory_space<vmem>>, vector<1x128x128xbf16>
    %11 = vector.shape_cast %10 : vector<1x128x128xbf16> to vector<128x128xbf16>
    %cst = arith.constant dense<0.000000e+00> : vector<8x128xf32>
    %12 = tpu.matmul %9, %11, %cst {dimension_numbers = #tpu.dot_dimension_numbers<[1], [0], [0], [1], [0, 0, 1, 1], [], []>} : vector<8x128xbf16>, vector<128x128xbf16>, vector<8x128xf32> -> vector<8x128xf32>
    %c1_11 = arith.constant 1 : index
    %c0_12 = arith.constant 0 : index
    %13 = vector.load %arg10[%c1_11, %c0_12] : memref<10x128xf32, #tpu.memory_space<vmem>>, vector<8x128xf32>
    %14 = arith.truncf %13 : vector<8x128xf32> to vector<8x128xbf16>
    %c1_13 = arith.constant 1 : index
    %c0_14 = arith.constant 0 : index
    %c0_15 = arith.constant 0 : index
    %15 = vector.load %arg3[%c1_13, %c0_14, %c0_15] : memref<3x128x128xbf16, #tpu.memory_space<vmem>>, vector<1x128x128xbf16>
    %16 = vector.shape_cast %15 : vector<1x128x128xbf16> to vector<128x128xbf16>
    %cst_16 = arith.constant dense<0.000000e+00> : vector<8x128xf32>
    %17 = tpu.matmul %14, %16, %cst_16 {dimension_numbers = #tpu.dot_dimension_numbers<[1], [0], [0], [1], [0, 0, 1, 1], [], []>} : vector<8x128xbf16>, vector<128x128xbf16>, vector<8x128xf32> -> vector<8x128xf32>
    %18 = arith.addf %12, %17 : vector<8x128xf32>
    %c2 = arith.constant 2 : index
    %c0_17 = arith.constant 0 : index
    %19 = vector.load %arg10[%c2, %c0_17] : memref<10x128xf32, #tpu.memory_space<vmem>>, vector<8x128xf32>
    %20 = arith.truncf %19 : vector<8x128xf32> to vector<8x128xbf16>
    %c2_18 = arith.constant 2 : index
    %c0_19 = arith.constant 0 : index
    %c0_20 = arith.constant 0 : index
    %21 = vector.load %arg3[%c2_18, %c0_19, %c0_20] : memref<3x128x128xbf16, #tpu.memory_space<vmem>>, vector<1x128x128xbf16>
    %22 = vector.shape_cast %21 : vector<1x128x128xbf16> to vector<128x128xbf16>
    %cst_21 = arith.constant dense<0.000000e+00> : vector<8x128xf32>
    %23 = tpu.matmul %20, %22, %cst_21 {dimension_numbers = #tpu.dot_dimension_numbers<[1], [0], [0], [1], [0, 0, 1, 1], [], []>} : vector<8x128xbf16>, vector<128x128xbf16>, vector<8x128xf32> -> vector<8x128xf32>
    %24 = arith.addf %18, %23 : vector<8x128xf32>
    %c0_22 = arith.constant 0 : index
    %c0_23 = arith.constant 0 : index
    %25 = vector.load %arg4[%c0_22, %c0_23] : memref<1x128xf32, #tpu.memory_space<vmem>>, vector<1x128xf32>
    %26 = vector.broadcast %25 : vector<1x128xf32> to vector<8x128xf32>
    %27 = arith.addf %24, %26 : vector<8x128xf32>
    %28 = vector.shape_cast %27 : vector<8x128xf32> to vector<1x8x128xf32>
    %cst_24 = arith.constant dense<0.000000e+00> : vector<1xf32>
    %29 = vector.multi_reduction <add>, %28, %cst_24 [1, 2] : vector<1x8x128xf32> to vector<1xf32>
    %30 = vector.shape_cast %29 : vector<1xf32> to vector<1x1x1xf32>
    %31 = vector.extract %30[0, 0, 0] : f32 from vector<1x1x1xf32>
    %32 = vector.broadcast %31 : f32 to vector<1x1xf32>
    %cst_25 = arith.constant 9.765625E-4 : f32
    %33 = vector.broadcast %cst_25 : f32 to vector<1x1xf32>
    %34 = arith.mulf %32, %33 : vector<1x1xf32>
    %35 = vector.broadcast %34 : vector<1x1xf32> to vector<8x128xf32>
    %36 = arith.subf %27, %35 : vector<8x128xf32>
    %37 = arith.mulf %36, %36 : vector<8x128xf32>
    %38 = vector.shape_cast %37 : vector<8x128xf32> to vector<1x8x128xf32>
    %cst_26 = arith.constant dense<0.000000e+00> : vector<1xf32>
    %39 = vector.multi_reduction <add>, %38, %cst_26 [1, 2] : vector<1x8x128xf32> to vector<1xf32>
    %40 = vector.shape_cast %39 : vector<1xf32> to vector<1x1x1xf32>
    %41 = vector.extract %40[0, 0, 0] : f32 from vector<1x1x1xf32>
    %42 = vector.broadcast %41 : f32 to vector<1x1xf32>
    %cst_27 = arith.constant 9.765625E-4 : f32
    %43 = vector.broadcast %cst_27 : f32 to vector<1x1xf32>
    %44 = arith.mulf %42, %43 : vector<1x1xf32>
    %cst_28 = arith.constant 9.99999974E-6 : f32
    %45 = vector.broadcast %cst_28 : f32 to vector<1x1xf32>
    %46 = arith.addf %44, %45 : vector<1x1xf32>
    %47 = math.rsqrt %46 : vector<1x1xf32>
    %48 = vector.broadcast %47 : vector<1x1xf32> to vector<8x128xf32>
    %49 = arith.mulf %36, %48 : vector<8x128xf32>
    %c0_29 = arith.constant 0 : index
    %c0_30 = arith.constant 0 : index
    %50 = vector.load %arg5[%c0_29, %c0_30] : memref<8x128xf32, #tpu.memory_space<vmem>>, vector<8x128xf32>
    %51 = arith.mulf %49, %50 : vector<8x128xf32>
    %c0_31 = arith.constant 0 : index
    %c0_32 = arith.constant 0 : index
    %52 = vector.load %arg6[%c0_31, %c0_32] : memref<8x128xf32, #tpu.memory_space<vmem>>, vector<8x128xf32>
    %53 = arith.addf %51, %52 : vector<8x128xf32>
    %54 = arith.negf %53 : vector<8x128xf32>
    %55 = math.exp %54 : vector<8x128xf32>
    %cst_33 = arith.constant 1.000000e+00 : f32
    %56 = vector.broadcast %cst_33 : f32 to vector<8x128xf32>
    %57 = arith.addf %56, %55 : vector<8x128xf32>
    %58 = arith.divf %56, %57 : vector<8x128xf32>
    %59 = arith.mulf %53, %58 : vector<8x128xf32>
    %c64_i32_34 = arith.constant 64 : i32
    %60 = tpu.dynamic_rotate %59 by %c64_i32_34 dim 1 : vector<8x128xf32>, i32 -> vector<8x128xf32>
    %61 = vector.extract_strided_slice %60 {offsets = [0, 0], sizes = [1, 128], strides = [1, 1]} : vector<8x128xf32> to vector<1x128xf32>
    %c0_35 = arith.constant 0 : index
    %c0_36 = arith.constant 0 : index
    %62 = vector.load %arg10[%c0_35, %c0_36] : memref<10x128xf32, #tpu.memory_space<vmem>>, vector<1x128xf32>
    tpu.vector_store %arg10[%c0_35, %c0_36], %61 {strides = array<i32>} : memref<10x128xf32, #tpu.memory_space<vmem>>, vector<1x128xf32>,
    %c1_37 = arith.constant 1 : index
    %c0_38 = arith.constant 0 : index
    %63 = vector.load %arg10[%c1_37, %c0_38] : memref<10x128xf32, #tpu.memory_space<vmem>>, vector<8x128xf32>
    tpu.vector_store %arg10[%c1_37, %c0_38], %59 {strides = array<i32>} : memref<10x128xf32, #tpu.memory_space<vmem>>, vector<8x128xf32>,
    %64 = vector.extract_strided_slice %60 {offsets = [7, 0], sizes = [1, 128], strides = [1, 1]} : vector<8x128xf32> to vector<1x128xf32>
    %c9_39 = arith.constant 9 : index
    %c0_40 = arith.constant 0 : index
    %65 = vector.load %arg10[%c9_39, %c0_40] : memref<10x128xf32, #tpu.memory_space<vmem>>, vector<1x128xf32>
    tpu.vector_store %arg10[%c9_39, %c0_40], %64 {strides = array<i32>} : memref<10x128xf32, #tpu.memory_space<vmem>>, vector<1x128xf32>,
    %c0_41 = arith.constant 0 : index
    %c0_42 = arith.constant 0 : index
    %66 = vector.load %arg10[%c0_41, %c0_42] : memref<10x128xf32, #tpu.memory_space<vmem>>, vector<8x128xf32>
    %67 = arith.truncf %66 : vector<8x128xf32> to vector<8x128xbf16>
    %c0_43 = arith.constant 0 : index
    %c0_44 = arith.constant 0 : index
    %c0_45 = arith.constant 0 : index
    %68 = vector.load %arg7[%c0_43, %c0_44, %c0_45] : memref<3x128x128xbf16, #tpu.memory_space<vmem>>, vector<1x128x128xbf16>
    %69 = vector.shape_cast %68 : vector<1x128x128xbf16> to vector<128x128xbf16>
    %cst_46 = arith.constant dense<0.000000e+00> : vector<8x128xf32>
    %70 = tpu.matmul %67, %69, %cst_46 {dimension_numbers = #tpu.dot_dimension_numbers<[1], [0], [0], [1], [0, 0, 1, 1], [], []>} : vector<8x128xbf16>, vector<128x128xbf16>, vector<8x128xf32> -> vector<8x128xf32>
    %c1_47 = arith.constant 1 : index
    %c0_48 = arith.constant 0 : index
    %71 = vector.load %arg10[%c1_47, %c0_48] : memref<10x128xf32, #tpu.memory_space<vmem>>, vector<8x128xf32>
    %72 = arith.truncf %71 : vector<8x128xf32> to vector<8x128xbf16>
    %c1_49 = arith.constant 1 : index
    %c0_50 = arith.constant 0 : index
    %c0_51 = arith.constant 0 : index
    %73 = vector.load %arg7[%c1_49, %c0_50, %c0_51] : memref<3x128x128xbf16, #tpu.memory_space<vmem>>, vector<1x128x128xbf16>
    %74 = vector.shape_cast %73 : vector<1x128x128xbf16> to vector<128x128xbf16>
    %cst_52 = arith.constant dense<0.000000e+00> : vector<8x128xf32>
    %75 = tpu.matmul %72, %74, %cst_52 {dimension_numbers = #tpu.dot_dimension_numbers<[1], [0], [0], [1], [0, 0, 1, 1], [], []>} : vector<8x128xbf16>, vector<128x128xbf16>, vector<8x128xf32> -> vector<8x128xf32>
    %76 = arith.addf %70, %75 : vector<8x128xf32>
    %c2_53 = arith.constant 2 : index
    %c0_54 = arith.constant 0 : index
    %77 = vector.load %arg10[%c2_53, %c0_54] : memref<10x128xf32, #tpu.memory_space<vmem>>, vector<8x128xf32>
    %78 = arith.truncf %77 : vector<8x128xf32> to vector<8x128xbf16>
    %c2_55 = arith.constant 2 : index
    %c0_56 = arith.constant 0 : index
    %c0_57 = arith.constant 0 : index
    %79 = vector.load %arg7[%c2_55, %c0_56, %c0_57] : memref<3x128x128xbf16, #tpu.memory_space<vmem>>, vector<1x128x128xbf16>
    %80 = vector.shape_cast %79 : vector<1x128x128xbf16> to vector<128x128xbf16>
    %cst_58 = arith.constant dense<0.000000e+00> : vector<8x128xf32>
    %81 = tpu.matmul %78, %80, %cst_58 {dimension_numbers = #tpu.dot_dimension_numbers<[1], [0], [0], [1], [0, 0, 1, 1], [], []>} : vector<8x128xbf16>, vector<128x128xbf16>, vector<8x128xf32> -> vector<8x128xf32>
    %82 = arith.addf %76, %81 : vector<8x128xf32>
    %c0_59 = arith.constant 0 : index
    %c0_60 = arith.constant 0 : index
    %83 = vector.load %arg8[%c0_59, %c0_60] : memref<1x128xf32, #tpu.memory_space<vmem>>, vector<1x128xf32>
    %84 = vector.broadcast %83 : vector<1x128xf32> to vector<8x128xf32>
    %85 = arith.addf %82, %84 : vector<8x128xf32>
    %86 = arith.negf %85 : vector<8x128xf32>
    %87 = math.exp %86 : vector<8x128xf32>
    %cst_61 = arith.constant 1.000000e+00 : f32
    %88 = vector.broadcast %cst_61 : f32 to vector<8x128xf32>
    %89 = arith.addf %88, %87 : vector<8x128xf32>
    %90 = arith.divf %88, %89 : vector<8x128xf32>
    %91 = arith.mulf %85, %90 : vector<8x128xf32>
    %c0_62 = arith.constant 0 : index
    %92 = memref.load %arg1[%c0_62] : memref<1xf32, #tpu.memory_space<smem>>
    %93 = vector.broadcast %92 : f32 to vector<8x128xf32>
    %94 = arith.mulf %93, %91 : vector<8x128xf32>
    %95 = arith.addf %1, %94 : vector<8x128xf32>
    %c0_63 = arith.constant 0 : index
    %c0_64 = arith.constant 0 : index
    %c0_65 = arith.constant 0 : index
    %96 = vector.load %arg9[%c0_63, %c0_64, %c0_65] : memref<1x8x128xf32, #tpu.memory_space<vmem>>, vector<1x8x128xf32>
    %97 = vector.shape_cast %96 : vector<1x8x128xf32> to vector<8x128xf32>
    %98 = vector.shape_cast %95 : vector<8x128xf32> to vector<1x8x128xf32>
    tpu.vector_store %arg9[%c0_63, %c0_64, %c0_65], %98 {strides = array<i32>} : memref<1x8x128xf32, #tpu.memory_space<vmem>>, vector<1x8x128xf32>,
    return
  }
  func.func @transform_0(%arg0: i32) -> i32 {
    %c0_i32 = arith.constant 0 : i32
    %c0_i32_0 = arith.constant 0 : i32
    return %c0_i32 : i32
  }
  func.func @transform_1(%arg0: i32) -> (i32, i32, i32) {
    %c0_i32 = arith.constant 0 : i32
    %c0_i32_0 = arith.constant 0 : i32
    %c0_i32_1 = arith.constant 0 : i32
    return %arg0, %c0_i32, %c0_i32_0 : i32, i32, i32
  }
  func.func @transform_2(%arg0: i32) -> (i32, i32, i32) {
    %c0_i32 = arith.constant 0 : i32
    %c0_i32_0 = arith.constant 0 : i32
    %c0_i32_1 = arith.constant 0 : i32
    %c0_i32_2 = arith.constant 0 : i32
    return %c0_i32, %c0_i32_0, %c0_i32_1 : i32, i32, i32
  }
  func.func @transform_3(%arg0: i32) -> (i32, i32) {
    %c0_i32 = arith.constant 0 : i32
    %c0_i32_0 = arith.constant 0 : i32
    %c0_i32_1 = arith.constant 0 : i32
    return %c0_i32, %c0_i32_0 : i32, i32
  }
  func.func @transform_4(%arg0: i32) -> (i32, i32) {
    %c0_i32 = arith.constant 0 : i32
    %c0_i32_0 = arith.constant 0 : i32
    %c0_i32_1 = arith.constant 0 : i32
    return %c0_i32, %c0_i32_0 : i32, i32
  }
  func.func @transform_5(%arg0: i32) -> (i32, i32) {
    %c0_i32 = arith.constant 0 : i32
    %c0_i32_0 = arith.constant 0 : i32
    %c0_i32_1 = arith.constant 0 : i32
    return %c0_i32, %c0_i32_0 : i32, i32
  }
  func.func @transform_6(%arg0: i32) -> (i32, i32, i32) {
    %c0_i32 = arith.constant 0 : i32
    %c0_i32_0 = arith.constant 0 : i32
    %c0_i32_1 = arith.constant 0 : i32
    %c0_i32_2 = arith.constant 0 : i32
    return %c0_i32, %c0_i32_0, %c0_i32_1 : i32, i32, i32
  }
  func.func @transform_7(%arg0: i32) -> (i32, i32) {
    %c0_i32 = arith.constant 0 : i32
    %c0_i32_0 = arith.constant 0 : i32
    %c0_i32_1 = arith.constant 0 : i32
    return %c0_i32, %c0_i32_0 : i32, i32
  }
  func.func @transform_8(%arg0: i32) -> (i32, i32, i32) {
    %c0_i32 = arith.constant 0 : i32
    %c0_i32_0 = arith.constant 0 : i32
    %c0_i32_1 = arith.constant 0 : i32
    return %arg0, %c0_i32, %c0_i32_0 : i32, i32, i32
  }
}

</mosaic_0001>

<llo_original>
// kernel: tpu_custom_call.1
$region0: #{tpu_custom_call.1}
  #allocation0 [shape = 'u32[]', space=smem, size = 0x4, offset = 0x4, fixed_abs, tag = 'smem constant byte address 0x4 - core index']
  #allocation1 [shape = 'u32[144,128]{1,0:T(1,128)}', space=vmem, size = 0x12000, scoped, tag = 'internal scratch']
  #allocation2 [shape = 'f32[10,128]{1,0:T(8,128)}', space=vmem, size = 0x2000, scoped, tag = 'scratch operand']
  #allocation3 [shape = 'f32[1]{0:T(128)S(6)}', space=smem, size = 0x200, scoped, tag = 'scoped memory for tpu_custom_call.1']
  %s0 = inlined_call_operand.<no memory space> [shape: f32[1], index: 0, kind: input, shape index: {}]
  %s1 = inlined_call_operand.hbm [shape: f32[2,8,128], index: 1, kind: input, shape index: {}]
  %s2 = inlined_call_operand.hbm [shape: bf16[3,128,128], index: 2, kind: input, shape index: {}]
  %s3 = inlined_call_operand.vmem [shape: f32[1,128], index: 3, kind: input, shape index: {}]
  %s4 = inlined_call_operand.vmem [shape: f32[8,128], index: 4, kind: input, shape index: {}]
  %s5 = inlined_call_operand.vmem [shape: f32[8,128], index: 5, kind: input, shape index: {}]
  %s6 = inlined_call_operand.hbm [shape: bf16[3,128,128], index: 6, kind: input, shape index: {}]
  %s7 = inlined_call_operand.vmem [shape: f32[1,128], index: 7, kind: input, shape index: {}]
  %s8 = inlined_call_operand.hbm [shape: f32[2,8,128], index: 8, kind: output, shape index: {}]
  %s9 = sld [smem:[#allocation0]]
  $region77: #{tpu_custom_call.1} parent=0
    _
  %s11 = ssub.s32 1, %s9
  %s12 = scalar_select 0, %s11, %s9
  %13 = sst [smem:[#allocation3]] %s0
  $region1: #{tpu_custom_call.1} parent=0
    #allocation4 [shape = 'u8[8192]{0}', space=vmem, size = 0x2000, scoped, tag = 'input window, operand 1']
    #allocation5 [shape = 's32[2]{0}', space=sflag, size = 0x8, scoped, tag = 'scoped memory for tpu_custom_call.1']
    #allocation6 [shape = 's32[2]{0}', space=sflag, size = 0x8, scoped, tag = 'scoped memory for tpu_custom_call.1']
    #allocation7 [shape = 'u8[98304]{0}', space=vmem, size = 0x18000, scoped, tag = 'input window, operand 2, single buffered']
    #allocation8 [shape = 's32[1]{0}', space=sflag, size = 0x4, scoped, tag = 'scoped memory for tpu_custom_call.1']
    #allocation9 [shape = 'u8[98304]{0}', space=vmem, size = 0x18000, scoped, tag = 'input window, operand 6, single buffered']
    #allocation10 [shape = 'u8[8192]{0}', space=vmem, size = 0x2000, scoped, tag = 'output window, operand 0']
    %14 = vsyncpa [#allocation5], 0
    %s15 = scalar_lea.sflag [#allocation5], 1
    %16 = vsyncpa %s15, 0
    %17 = vsyncpa [#allocation8], 0
    %18 = vsyncpa [#allocation6], 0
    %s19 = scalar_lea.sflag [#allocation6], 1
    %20 = vsyncpa %s19, 0
    loop: start=0, step=1, limit=4
    $region2: #{tpu_custom_call.1} parent=1 // loop_pre_header
      _
    $region3: #{tpu_custom_call.1} parent=1 // loop_header
      %s22 = sphi 0, %s26
      %p23 = scmp.ge.s32.totalorder %s22, 4
      %s30 = sphi 0, %s30
      %s32 = sphi 0, %s30
      %s33 = sphi 0, %s32
      %s47 = sphi 0, %s33
      %s53 = sphi 0, %s55
      %s56 = sphi 0, %s53
      %s57 = sphi 0, %s56
      %s73 = sphi 0, %s57
      %s77 = sphi 0, %s77
      %s79 = sphi 0, %s77
      %s80 = sphi 0, %s79
      %s94 = sphi 0, %s80
      %s98 = sphi 0, %s98
      %s100 = sphi 0, %s98
      %s101 = sphi 0, %s100
      %s115 = sphi 0, %s101
      %s119 = sphi 0, %s119
      %s121 = sphi 0, %s119
      %s122 = sphi 0, %s121
      %s136 = sphi 0, %s122
      %s140 = sphi 0, %s140
      %s142 = sphi 0, %s140
      %s143 = sphi 0, %s142
      %s157 = sphi 0, %s143
      %s161 = sphi 0, %s161
      %s163 = sphi 0, %s161
      %s164 = sphi 0, %s163
      %s178 = sphi 0, %s164
      %s182 = sphi 0, %s182
      %s184 = sphi 0, %s182
      %s185 = sphi 0, %s184
      %s199 = sphi 0, %s185
      %s205 = sphi 0, %s207
      %s208 = sphi 0, %s205
      %s209 = sphi 0, %s208
      %s225 = sphi 0, %s209
    $region4: #{tpu_custom_call.1} parent=1 // loop_header_branch
      %25 = sbr.rel (%p23) target = $region8
    $region5: #{tpu_custom_call.1} parent=1 // loop_body
      %s27 = ssub.s32 %s22, 1
      %s28 = ssub.s32 %s22, 2
      %s29 = sadd.s32 %s22, 1
      %s31 = sadd.s32 %s30, 1
      %p34 = scmp.eq.s32.totalorder %s22, 1
      %p35 = scmp.ne.s32.totalorder %s30, %s32
      %p36 = scmp.eq.s32.totalorder %s22, 0
      %p37 = por %p35, %p36
      %p38 = scmp.ne.s32.totalorder %s30, %s32
      %p39 = scmp.eq.s32.totalorder %s27, 1
      %p40 = por %p38, %p39
      %p41 = scmp.ne.s32.totalorder %s32, %s33
      %p42 = scmp.eq.s32.totalorder %s27, 0
      %p43 = por %p41, %p42
      %p44 = scmp.ne.s32.totalorder %s32, %s33
      %p45 = scmp.eq.s32.totalorder %s28, 1
      %p46 = por %p44, %p45
      %p48 = scmp.ne.s32.totalorder %s33, %s47
      %p49 = scmp.eq.s32.totalorder %s28, 0
      %p50 = por %p48, %p49
      %s51 = ssub.s32 %s22, %s29
      %p52 = scmp.eq.s32.totalorder %s51, 0
      %s54 = sadd.s32 %s53, 1
      %s55 = scalar_select %p52, %s53, %s54
      %p58 = pneg %p52
      %p59 = scmp.eq.s32.totalorder %s22, 1
      %p60 = por %p58, %p59
      %p61 = scmp.ne.s32.totalorder %s53, %s56
      %p62 = scmp.eq.s32.totalorder %s22, 0
      %p63 = por %p61, %p62
      %p64 = scmp.ne.s32.totalorder %s53, %s56
      %p65 = scmp.eq.s32.totalorder %s27, 1
      %p66 = por %p64, %p65
      %p67 = scmp.ne.s32.totalorder %s56, %s57
      %p68 = scmp.eq.s32.totalorder %s27, 0
      %p69 = por %p67, %p68
      %p70 = scmp.ne.s32.totalorder %s56, %s57
      %p71 = scmp.eq.s32.totalorder %s28, 1
      %p72 = por %p70, %p71
      %p74 = scmp.ne.s32.totalorder %s57, %s73
      %p75 = scmp.eq.s32.totalorder %s28, 0
      %p76 = por %p74, %p75
      %s78 = sadd.s32 %s77, 1
      %p81 = scmp.eq.s32.totalorder %s22, 1
      %p82 = scmp.ne.s32.totalorder %s77, %s79
      %p83 = scmp.eq.s32.totalorder %s22, 0
      %p84 = por %p82, %p83
      %p85 = scmp.ne.s32.totalorder %s77, %s79
      %p86 = scmp.eq.s32.totalorder %s27, 1
      %p87 = por %p85, %p86
      %p88 = scmp.ne.s32.totalorder %s79, %s80
      %p89 = scmp.eq.s32.totalorder %s27, 0
      %p90 = por %p88, %p89
      %p91 = scmp.ne.s32.totalorder %s79, %s80
      %p92 = scmp.eq.s32.totalorder %s28, 1
      %p93 = por %p91, %p92
      %p95 = scmp.ne.s32.totalorder %s80, %s94
      %p96 = scmp.eq.s32.totalorder %s28, 0
      %p97 = por %p95, %p96
      %s99 = sadd.s32 %s98, 1
      %p102 = scmp.eq.s32.totalorder %s22, 1
      %p103 = scmp.ne.s32.totalorder %s98, %s100
      %p104 = scmp.eq.s32.totalorder %s22, 0
      %p105 = por %p103, %p104
      %p106 = scmp.ne.s32.totalorder %s98, %s100
      %p107 = scmp.eq.s32.totalorder %s27, 1
      %p108 = por %p106, %p107
      %p109 = scmp.ne.s32.totalorder %s100, %s101
      %p110 = scmp.eq.s32.totalorder %s27, 0
      %p111 = por %p109, %p110
      %p112 = scmp.ne.s32.totalorder %s100, %s101
      %p113 = scmp.eq.s32.totalorder %s28, 1
      %p114 = por %p112, %p113
      %p116 = scmp.ne.s32.totalorder %s101, %s115
      %p117 = scmp.eq.s32.totalorder %s28, 0
      %p118 = por %p116, %p117
      %s120 = sadd.s32 %s119, 1
      %p123 = scmp.eq.s32.totalorder %s22, 1
      %p124 = scmp.ne.s32.totalorder %s119, %s121
      %p125 = scmp.eq.s32.totalorder %s22, 0
      %p126 = por %p124, %p125
      %p127 = scmp.ne.s32.totalorder %s119, %s121
      %p128 = scmp.eq.s32.totalorder %s27, 1
      %p129 = por %p127, %p128
      %p130 = scmp.ne.s32.totalorder %s121, %s122
      %p131 = scmp.eq.s32.totalorder %s27, 0
      %p132 = por %p130, %p131
      %p133 = scmp.ne.s32.totalorder %s121, %s122
      %p134 = scmp.eq.s32.totalorder %s28, 1
      %p135 = por %p133, %p134
      %p137 = scmp.ne.s32.totalorder %s122, %s136
      %p138 = scmp.eq.s32.totalorder %s28, 0
      %p139 = por %p137, %p138
      %s141 = sadd.s32 %s140, 1
      %p144 = scmp.eq.s32.totalorder %s22, 1
      %p145 = scmp.ne.s32.totalorder %s140, %s142
      %p146 = scmp.eq.s32.totalorder %s22, 0
      %p147 = por %p145, %p146
      %p148 = scmp.ne.s32.totalorder %s140, %s142
      %p149 = scmp.eq.s32.totalorder %s27, 1
      %p150 = por %p148, %p149
      %p151 = scmp.ne.s32.totalorder %s142, %s143
      %p152 = scmp.eq.s32.totalorder %s27, 0
      %p153 = por %p151, %p152
      %p154 = scmp.ne.s32.totalorder %s142, %s143
      %p155 = scmp.eq.s32.totalorder %s28, 1
      %p156 = por %p154, %p155
      %p158 = scmp.ne.s32.totalorder %s143, %s157
      %p159 = scmp.eq.s32.totalorder %s28, 0
      %p160 = por %p158, %p159
      %s162 = sadd.s32 %s161, 1
      %p165 = scmp.eq.s32.totalorder %s22, 1
      %p166 = scmp.ne.s32.totalorder %s161, %s163
      %p167 = scmp.eq.s32.totalorder %s22, 0
      %p168 = por %p166, %p167
      %p169 = scmp.ne.s32.totalorder %s161, %s163
      %p170 = scmp.eq.s32.totalorder %s27, 1
      %p171 = por %p169, %p170
      %p172 = scmp.ne.s32.totalorder %s163, %s164
      %p173 = scmp.eq.s32.totalorder %s27, 0
      %p174 = por %p172, %p173
      %p175 = scmp.ne.s32.totalorder %s163, %s164
      %p176 = scmp.eq.s32.totalorder %s28, 1
      %p177 = por %p175, %p176
      %p179 = scmp.ne.s32.totalorder %s164, %s178
      %p180 = scmp.eq.s32.totalorder %s28, 0
      %p181 = por %p179, %p180
      %s183 = sadd.s32 %s182, 1
      %p186 = scmp.eq.s32.totalorder %s22, 1
      %p187 = scmp.ne.s32.totalorder %s182, %s184
      %p188 = scmp.eq.s32.totalorder %s22, 0
      %p189 = por %p187, %p188
      %p190 = scmp.ne.s32.totalorder %s182, %s184
      %p191 = scmp.eq.s32.totalorder %s27, 1
      %p192 = por %p190, %p191
      %p193 = scmp.ne.s32.totalorder %s184, %s185
      %p194 = scmp.eq.s32.totalorder %s27, 0
      %p195 = por %p193, %p194
      %p196 = scmp.ne.s32.totalorder %s184, %s185
      %p197 = scmp.eq.s32.totalorder %s28, 1
      %p198 = por %p196, %p197
      %p200 = scmp.ne.s32.totalorder %s185, %s199
      %p201 = scmp.eq.s32.totalorder %s28, 0
      %p202 = por %p200, %p201
      %s203 = ssub.s32 %s22, %s29
      %p204 = scmp.eq.s32.totalorder %s203, 0
      %s206 = sadd.s32 %s205, 1
      %s207 = scalar_select %p204, %s205, %s206
      %p210 = pneg %p204
      %p211 = scmp.eq.s32.totalorder %s22, 1
      %p212 = por %p210, %p211
      %p213 = scmp.ne.s32.totalorder %s205, %s208
      %p214 = scmp.eq.s32.totalorder %s22, 0
      %p215 = por %p213, %p214
      %p216 = scmp.ne.s32.totalorder %s205, %s208
      %p217 = scmp.eq.s32.totalorder %s27, 1
      %p218 = por %p216, %p217
      %p219 = scmp.ne.s32.totalorder %s208, %s209
      %p220 = scmp.eq.s32.totalorder %s27, 0
      %p221 = por %p219, %p220
      %p222 = scmp.ne.s32.totalorder %s208, %s209
      %p223 = scmp.eq.s32.totalorder %s28, 1
      %p224 = por %p222, %p223
      %p226 = scmp.ne.s32.totalorder %s209, %s225
      %p227 = scmp.eq.s32.totalorder %s28, 0
      %p228 = por %p226, %p227
      %p229 = scmp.le.s32.totalorder 1, %s22
      %p230 = scmp.lt.s32.totalorder %s22, 3
      %p231 = pnand %p229, %p230
      %p232 = pneg %p231
      // Predicated region
      $region9: #{tpu_custom_call.1} parent=5 // pred_check
        _
      $region10: #{tpu_custom_call.1} parent=5 // pred_check_branch
        %234 = sbr.rel (%p231) target = $region12
      $region11: #{tpu_custom_call.1} parent=5 // pred_region
        %s235 = ssub.s32 %s22, 1
        // Predicated region
        $region13: #{tpu_custom_call.1} parent=11 // pred_check
          %p236 = pneg %p43
        $region14: #{tpu_custom_call.1} parent=11 // pred_check_branch
          %238 = sbr.rel (%p236) target = $region16
        $region15: #{tpu_custom_call.1} parent=11 // pred_region
          _
        $region16: #{tpu_custom_call.1} parent=11 // pred_fallthru
          _
        // Predicated region
        $region17: #{tpu_custom_call.1} parent=11 // pred_check
          %p239 = pneg %p90
        $region18: #{tpu_custom_call.1} parent=11 // pred_check_branch
          %241 = sbr.rel (%p239) target = $region20
        $region19: #{tpu_custom_call.1} parent=11 // pred_region
          %s243 = ssub.s32 3072, 3072
          %244 = vsyncadd [#allocation8], %s243
          %s245 = sshll.u32 [#allocation7], 4
          %s246 = int_to_ptr.vmem [resolvable:$true] %s245
          %251 = dma.hbm_to_vmem [thread:$0]  %s2, 3072, %s246, [#allocation8], 64, 64, 4
        $region20: #{tpu_custom_call.1} parent=11 // pred_fallthru
          _
        // Predicated region
        $region21: #{tpu_custom_call.1} parent=11 // pred_check
          %p252 = pneg %p111
        $region22: #{tpu_custom_call.1} parent=11 // pred_check_branch
          %254 = sbr.rel (%p252) target = $region24
        $region23: #{tpu_custom_call.1} parent=11 // pred_region
          _
        $region24: #{tpu_custom_call.1} parent=11 // pred_fallthru
          _
        // Predicated region
        $region25: #{tpu_custom_call.1} parent=11 // pred_check
          %p255 = pneg %p132
        $region26: #{tpu_custom_call.1} parent=11 // pred_check_branch
          %257 = sbr.rel (%p255) target = $region28
        $region27: #{tpu_custom_call.1} parent=11 // pred_region
          _
        $region28: #{tpu_custom_call.1} parent=11 // pred_fallthru
          _
        // Predicated region
        $region29: #{tpu_custom_call.1} parent=11 // pred_check
          %p258 = pneg %p153
        $region30: #{tpu_custom_call.1} parent=11 // pred_check_branch
          %260 = sbr.rel (%p258) target = $region32
        $region31: #{tpu_custom_call.1} parent=11 // pred_region
          _
        $region32: #{tpu_custom_call.1} parent=11 // pred_fallthru
          _
        // Predicated region
        $region33: #{tpu_custom_call.1} parent=11 // pred_check
          %p261 = pneg %p174
        $region34: #{tpu_custom_call.1} parent=11 // pred_check_branch
          %263 = sbr.rel (%p261) target = $region36
        $region35: #{tpu_custom_call.1} parent=11 // pred_region
          %s265 = ssub.s32 3072, 3072
          %266 = vsyncadd [#allocation8], %s265
          %s267 = sshll.u32 [#allocation9], 4
          %s268 = int_to_ptr.vmem [resolvable:$true] %s267
          %273 = dma.hbm_to_vmem [thread:$0]  %s6, 3072, %s268, [#allocation8], 64, 64, 4
        $region36: #{tpu_custom_call.1} parent=11 // pred_fallthru
          _
        // Predicated region
        $region37: #{tpu_custom_call.1} parent=11 // pred_check
          %p274 = pneg %p195
        $region38: #{tpu_custom_call.1} parent=11 // pred_check_branch
          %276 = sbr.rel (%p274) target = $region40
        $region39: #{tpu_custom_call.1} parent=11 // pred_region
          _
        $region40: #{tpu_custom_call.1} parent=11 // pred_fallthru
          _
      $region12: #{tpu_custom_call.1} parent=5 // pred_fallthru
        _
      %p277 = scmp.lt.s32.totalorder %s22, 2
      // Predicated region
      $region41: #{tpu_custom_call.1} parent=5 // pred_check
        %p278 = pneg %p277
      $region42: #{tpu_custom_call.1} parent=5 // pred_check_branch
        %280 = sbr.rel (%p278) target = $region44
      $region43: #{tpu_custom_call.1} parent=5 // pred_region
        // Predicated region
        $region45: #{tpu_custom_call.1} parent=43 // pred_check
          %p281 = pneg %p63
        $region46: #{tpu_custom_call.1} parent=43 // pred_check_branch
          %283 = sbr.rel (%p281) target = $region48
        $region47: #{tpu_custom_call.1} parent=43 // pred_region
          %s284 = sand.u32 %s53, 1
          %s285 = scalar_lea.sflag [#allocation5], %s284
          %s286 = sand.u32 %s53, 1
          %s287 = smul.addr %s286, 8
          %s288 = scalar_lea.vmem [#allocation4], %s287
          %s290 = ssub.s32 128, 128
          %291 = vsyncadd %s285, %s290
          %s292 = smul.addr %s22, 128
          %s293 = scalar_lea.hbm %s1, %s292
          %s295 = sshll.u32 %s288, 4
          %s296 = int_to_ptr.vmem [resolvable:$true] %s295
          %298 = dma.hbm_to_vmem [thread:$0]  %s293, 128, %s296, %s285
        $region48: #{tpu_custom_call.1} parent=43 // pred_fallthru
          _
      $region44: #{tpu_custom_call.1} parent=5 // pred_fallthru
        _
      %p299 = scmp.le.s32.totalorder 1, %s22
      %p300 = scmp.lt.s32.totalorder %s22, 3
      %p301 = pnand %p299, %p300
      %p302 = pneg %p301
      // Predicated region
      $region49: #{tpu_custom_call.1} parent=5 // pred_check
        _
      $region50: #{tpu_custom_call.1} parent=5 // pred_check_branch
        %304 = sbr.rel (%p301) target = $region52
      $region51: #{tpu_custom_call.1} parent=5 // pred_region
        %s305 = ssub.s32 %s22, 1
        %s306 = sand.u32 %s56, 1
        %s307 = scalar_lea.sflag [#allocation5], %s306
        %s308 = sand.u32 %s56, 1
        %s309 = smul.addr %s308, 8
        %s310 = scalar_lea.vmem [#allocation4], %s309
        // Predicated region
        $region53: #{tpu_custom_call.1} parent=51 // pred_check
          %p311 = pneg %p69
        $region54: #{tpu_custom_call.1} parent=51 // pred_check_branch
          %313 = sbr.rel (%p311) target = $region56
        $region55: #{tpu_custom_call.1} parent=51 // pred_region
          %314 = dma.done %s307, 128
        $region56: #{tpu_custom_call.1} parent=51 // pred_fallthru
          _
        // Predicated region
        $region57: #{tpu_custom_call.1} parent=51 // pred_check
          %p315 = pneg %p90
        $region58: #{tpu_custom_call.1} parent=51 // pred_check_branch
          %317 = sbr.rel (%p315) target = $region60
        $region59: #{tpu_custom_call.1} parent=51 // pred_region
          %318 = dma.done [#allocation8], 3072
        $region60: #{tpu_custom_call.1} parent=51 // pred_fallthru
          _
        // Predicated region
        $region61: #{tpu_custom_call.1} parent=51 // pred_check
          %p319 = pneg %p174
        $region62: #{tpu_custom_call.1} parent=51 // pred_check_branch
          %321 = sbr.rel (%p319) target = $region64
        $region63: #{tpu_custom_call.1} parent=51 // pred_region
          %322 = dma.done [#allocation8], 3072
        $region64: #{tpu_custom_call.1} parent=51 // pred_fallthru
          _
        %p323 = pneg %p43
        %p324 = pneg %p40
        %s325 = sand.u32 %s56, 1
        %s326 = scalar_lea.sflag [#allocation5], %s325
        %s327 = sand.u32 %s56, 1
        %s328 = smul.addr %s327, 8
        %s329 = scalar_lea.vmem [#allocation4], %s328
        %p330 = pneg %p69
        %p331 = pneg %p66
        %p332 = pneg %p90
        %p333 = pneg %p87
        %p334 = pneg %p111
        %p335 = pneg %p108
        %p336 = pneg %p132
        %p337 = pneg %p129
        %p338 = pneg %p153
        %p339 = pneg %p150
        %p340 = pneg %p174
        %p341 = pneg %p171
        %p342 = pneg %p195
        %p343 = pneg %p192
        %p344 = pneg %p221
        %p345 = pneg %p218
        %s346 = sand.u32 %s208, 1
        %s347 = scalar_lea.sflag [#allocation6], %s346
        %s348 = sand.u32 %s208, 1
        %s349 = smul.addr %s348, 8
        %s350 = scalar_lea.vmem [#allocation10], %s349
        %v352 = vld [vmem:[%s310] sm:$0xff]
        %353 = vrot.lane.b32.xlu0 %v352, 64
        %v354 = vpop.permute.xlu0 %353
        %355 = vst [vmem:[#allocation2] sm:$0x1] %v354
        %356 = vst [vmem:[#allocation2 + $0x1] sm:$0xff] %v352
        %357 = vst [vmem:[#allocation2 + $0x2] sm:$0x80] %v354
        %v358 = vld [vmem:[#allocation2] sm:$0xff]
        %v359 = vpack.c.bf16 %v358, %v358
        %v360 = vld [vmem:[#allocation7] sm:$0xf]
        %v361 = vld [vmem:[#allocation7 + $0x4] sm:$0xf]
        %v362 = vld [vmem:[#allocation7 + $0x8] sm:$0xf]
        %v363 = vld [vmem:[#allocation7 + $0xc] sm:$0xf]
        %v364 = vld [vmem:[#allocation7 + $0x10] sm:$0xf]
        %v365 = vld [vmem:[#allocation7 + $0x14] sm:$0xf]
        %v366 = vld [vmem:[#allocation7 + $0x18] sm:$0xf]
        %v367 = vld [vmem:[#allocation7 + $0x1c] sm:$0xf]
        %v368 = vld [vmem:[#allocation7 + $0x20] sm:$0xf]
        %v369 = vld [vmem:[#allocation7 + $0x24] sm:$0xf]
        %v370 = vld [vmem:[#allocation7 + $0x28] sm:$0xf]
        %v371 = vld [vmem:[#allocation7 + $0x2c] sm:$0xf]
        %v372 = vld [vmem:[#allocation7 + $0x30] sm:$0xf]
        %v373 = vld [vmem:[#allocation7 + $0x34] sm:$0xf]
        %v374 = vld [vmem:[#allocation7 + $0x38] sm:$0xf]
        %v375 = vld [vmem:[#allocation7 + $0x3c] sm:$0xf]
        %v376 = vld [vmem:[#allocation2 + $0x1] sm:$0xff]
        %v377 = vpack.c.bf16 %v376, %v376
        %s378 = scalar_lea.vmem [#allocation7], 64
        %v379 = vld [vmem:[%s378] sm:$0xf]
        %v380 = vld [vmem:[%s378 + $0x4] sm:$0xf]
        %v381 = vld [vmem:[%s378 + $0x8] sm:$0xf]
        %v382 = vld [vmem:[%s378 + $0xc] sm:$0xf]
        %v383 = vld [vmem:[%s378 + $0x10] sm:$0xf]
        %v384 = vld [vmem:[%s378 + $0x14] sm:$0xf]
        %v385 = vld [vmem:[%s378 + $0x18] sm:$0xf]
        %v386 = vld [vmem:[%s378 + $0x1c] sm:$0xf]
        %v387 = vld [vmem:[%s378 + $0x20] sm:$0xf]
        %v388 = vld [vmem:[%s378 + $0x24] sm:$0xf]
        %v389 = vld [vmem:[%s378 + $0x28] sm:$0xf]
        %v390 = vld [vmem:[%s378 + $0x2c] sm:$0xf]
        %v391 = vld [vmem:[%s378 + $0x30] sm:$0xf]
        %v392 = vld [vmem:[%s378 + $0x34] sm:$0xf]
        %v393 = vld [vmem:[%s378 + $0x38] sm:$0xf]
        %v394 = vld [vmem:[%s378 + $0x3c] sm:$0xf]
        %v411 = vunpack.c.l.b16 %v379
        %v412 = vunpack.c.l.b16 %v380
        %v413 = vunpack.c.l.b16 %v381
        %v414 = vunpack.c.l.b16 %v382
        %v415 = vunpack.c.l.b16 %v383
        %v416 = vunpack.c.l.b16 %v384
        %v417 = vunpack.c.l.b16 %v385
        %v418 = vunpack.c.l.b16 %v386
        %v419 = vunpack.c.l.b16 %v387
        %v420 = vunpack.c.l.b16 %v388
        %v421 = vunpack.c.l.b16 %v389
        %v422 = vunpack.c.l.b16 %v390
        %v423 = vunpack.c.l.b16 %v391
        %v424 = vunpack.c.l.b16 %v392
        %v425 = vunpack.c.l.b16 %v393
        %v426 = vunpack.c.l.b16 %v394
        %v427 = vpack.c.b16 %v412, %v411
        %v428 = vpack.c.b16 %v414, %v413
        %v429 = vpack.c.b16 %v416, %v415
        %v430 = vpack.c.b16 %v418, %v417
        %v431 = vpack.c.b16 %v420, %v419
        %v432 = vpack.c.b16 %v422, %v421
        %v433 = vpack.c.b16 %v424, %v423
        %v434 = vpack.c.b16 %v426, %v425
        %443 = vmatprep.subr.bf16.mxu0 0
        %444 = vmatpush1.bf16.msra.mxu0 %v427
        %445 = vmatprep.subr.bf16.mxu0 0
        %446 = vmatpush1.bf16.msra.mxu0 %v428
        %447 = vmatprep.subr.bf16.mxu0 0
        %448 = vmatpush1.bf16.msra.mxu0 %v429
        %449 = vmatprep.subr.bf16.mxu0 0
        %450 = vmatpush1.bf16.msra.mxu0 %v430
        %451 = vmatprep.subr.bf16.mxu0 0
        %452 = vmatpush1.bf16.msra.mxu0 %v431
        %453 = vmatprep.subr.bf16.mxu0 0
        %454 = vmatpush1.bf16.msra.mxu0 %v432
        %455 = vmatprep.subr.bf16.mxu0 0
        %456 = vmatpush1.bf16.msra.mxu0 %v433
        %457 = vmatprep.subr.bf16.mxu0 0
        %458 = vmatpush1.bf16.msra.mxu0 %v434
        %459 = vmatprep.subr.bf16.mxu0 0
        %460 = vmatpush1.bf16.msra.mxu0 0
        %461 = vmatprep.subr.bf16.mxu0 0
        %462 = vmatpush1.bf16.msra.mxu0 0
        %463 = vmatprep.subr.bf16.mxu0 0
        %464 = vmatpush1.bf16.msra.mxu0 0
        %465 = vmatprep.subr.bf16.mxu0 0
        %466 = vmatpush1.bf16.msra.mxu0 0
        %467 = vmatprep.subr.bf16.mxu0 0
        %468 = vmatpush1.bf16.msra.mxu0 0
        %469 = vmatprep.subr.bf16.mxu0 0
        %470 = vmatpush1.bf16.msra.mxu0 0
        %471 = vmatprep.subr.bf16.mxu0 0
        %472 = vmatpush1.bf16.msra.mxu0 0
        %473 = vmatprep.subr.bf16.mxu0 0
        %474 = vmatpush1.bf16.msra.mxu0 0
        %475 = vmatprep.mubr.bf16.mxu0 0
        %476 = vmatmul.mubr.bf16.gmra.mrb[0].mxu0 %v377
        %v477 = vpop.f32.mrb[0].mxu0
        %v478 = vadd.f32 0.0, %v477
        %v479 = vpop.f32.mrb[0].mxu0
        %v480 = vpop.f32.mrb[0].mxu0
        %v481 = vpop.f32.mrb[0].mxu0
        %482 = vdwg.mxu0
        %v499 = vunpack.c.l.b16 %v360
        %v500 = vunpack.c.l.b16 %v361
        %v501 = vunpack.c.l.b16 %v362
        %v502 = vunpack.c.l.b16 %v363
        %v503 = vunpack.c.l.b16 %v364
        %v504 = vunpack.c.l.b16 %v365
        %v505 = vunpack.c.l.b16 %v366
        %v506 = vunpack.c.l.b16 %v367
        %v507 = vunpack.c.l.b16 %v368
        %v508 = vunpack.c.l.b16 %v369
        %v509 = vunpack.c.l.b16 %v370
        %v510 = vunpack.c.l.b16 %v371
        %v511 = vunpack.c.l.b16 %v372
        %v512 = vunpack.c.l.b16 %v373
        %v513 = vunpack.c.l.b16 %v374
        %v514 = vunpack.c.l.b16 %v375
        %v515 = vpack.c.b16 %v500, %v499
        %v516 = vpack.c.b16 %v502, %v501
        %v517 = vpack.c.b16 %v504, %v503
        %v518 = vpack.c.b16 %v506, %v505
        %v519 = vpack.c.b16 %v508, %v507
        %v520 = vpack.c.b16 %v510, %v509
        %v521 = vpack.c.b16 %v512, %v511
        %v522 = vpack.c.b16 %v514, %v513
        %531 = vmatprep.subr.bf16.mxu0 0
        %532 = vmatpush1.bf16.msra.mxu0 %v515
        %533 = vmatprep.subr.bf16.mxu0 0
        %534 = vmatpush1.bf16.msra.mxu0 %v516
        %535 = vmatprep.subr.bf16.mxu0 0
        %536 = vmatpush1.bf16.msra.mxu0 %v517
        %537 = vmatprep.subr.bf16.mxu0 0
        %538 = vmatpush1.bf16.msra.mxu0 %v518
        %539 = vmatprep.subr.bf16.mxu0 0
        %540 = vmatpush1.bf16.msra.mxu0 %v519
        %541 = vmatprep.subr.bf16.mxu0 0
        %542 = vmatpush1.bf16.msra.mxu0 %v520
        %543 = vmatprep.subr.bf16.mxu0 0
        %544 = vmatpush1.bf16.msra.mxu0 %v521
        %545 = vmatprep.subr.bf16.mxu0 0
        %546 = vmatpush1.bf16.msra.mxu0 %v522
        %547 = vmatprep.subr.bf16.mxu0 0
        %548 = vmatpush1.bf16.msra.mxu0 0
        %549 = vmatprep.subr.bf16.mxu0 0
        %550 = vmatpush1.bf16.msra.mxu0 0
        %551 = vmatprep.subr.bf16.mxu0 0
        %552 = vmatpush1.bf16.msra.mxu0 0
        %553 = vmatprep.subr.bf16.mxu0 0
        %554 = vmatpush1.bf16.msra.mxu0 0
        %555 = vmatprep.subr.bf16.mxu0 0
        %556 = vmatpush1.bf16.msra.mxu0 0
        %557 = vmatprep.subr.bf16.mxu0 0
        %558 = vmatpush1.bf16.msra.mxu0 0
        %559 = vmatprep.subr.bf16.mxu0 0
        %560 = vmatpush1.bf16.msra.mxu0 0
        %561 = vmatprep.subr.bf16.mxu0 0
        %562 = vmatpush1.bf16.msra.mxu0 0
        %563 = vmatprep.mubr.bf16.mxu0 0
        %564 = vmatmul.mubr.bf16.gmra.mrb[0].mxu0 %v359
        %v565 = vpop.f32.mrb[0].mxu0
        %v566 = vadd.f32 %v478, %v565
        %v567 = vpop.f32.mrb[0].mxu0
        %v568 = vpop.f32.mrb[0].mxu0
        %v569 = vpop.f32.mrb[0].mxu0
        %570 = vdwg.mxu0
        %v571 = vld [vmem:[#allocation2 + $0x2] sm:$0xff]
        %v572 = vpack.c.bf16 %v571, %v571
        %s573 = scalar_lea.vmem [#allocation7], 128
        %v574 = vld [vmem:[%s573] sm:$0xf]
        %v575 = vld [vmem:[%s573 + $0x4] sm:$0xf]
        %v576 = vld [vmem:[%s573 + $0x8] sm:$0xf]
        %v577 = vld [vmem:[%s573 + $0xc] sm:$0xf]
        %v578 = vld [vmem:[%s573 + $0x10] sm:$0xf]
        %v579 = vld [vmem:[%s573 + $0x14] sm:$0xf]
        %v580 = vld [vmem:[%s573 + $0x18] sm:$0xf]
        %v581 = vld [vmem:[%s573 + $0x1c] sm:$0xf]
        %v582 = vld [vmem:[%s573 + $0x20] sm:$0xf]
        %v583 = vld [vmem:[%s573 + $0x24] sm:$0xf]
        %v584 = vld [vmem:[%s573 + $0x28] sm:$0xf]
        %v585 = vld [vmem:[%s573 + $0x2c] sm:$0xf]
        %v586 = vld [vmem:[%s573 + $0x30] sm:$0xf]
        %v587 = vld [vmem:[%s573 + $0x34] sm:$0xf]
        %v588 = vld [vmem:[%s573 + $0x38] sm:$0xf]
        %v589 = vld [vmem:[%s573 + $0x3c] sm:$0xf]
        %v606 = vunpack.c.l.b16 %v574
        %v607 = vunpack.c.l.b16 %v575
        %v608 = vunpack.c.l.b16 %v576
        %v609 = vunpack.c.l.b16 %v577
        %v610 = vunpack.c.l.b16 %v578
        %v611 = vunpack.c.l.b16 %v579
        %v612 = vunpack.c.l.b16 %v580
        %v613 = vunpack.c.l.b16 %v581
        %v614 = vunpack.c.l.b16 %v582
        %v615 = vunpack.c.l.b16 %v583
        %v616 = vunpack.c.l.b16 %v584
        %v617 = vunpack.c.l.b16 %v585
        %v618 = vunpack.c.l.b16 %v586
        %v619 = vunpack.c.l.b16 %v587
        %v620 = vunpack.c.l.b16 %v588
        %v621 = vunpack.c.l.b16 %v589
        %v622 = vpack.c.b16 %v607, %v606
        %v623 = vpack.c.b16 %v609, %v608
        %v624 = vpack.c.b16 %v611, %v610
        %v625 = vpack.c.b16 %v613, %v612
        %v626 = vpack.c.b16 %v615, %v614
        %v627 = vpack.c.b16 %v617, %v616
        %v628 = vpack.c.b16 %v619, %v618
        %v629 = vpack.c.b16 %v621, %v620
        %638 = vmatprep.subr.bf16.mxu0 0
        %639 = vmatpush1.bf16.msra.mxu0 %v622
        %640 = vmatprep.subr.bf16.mxu0 0
        %641 = vmatpush1.bf16.msra.mxu0 %v623
        %642 = vmatprep.subr.bf16.mxu0 0
        %643 = vmatpush1.bf16.msra.mxu0 %v624
        %644 = vmatprep.subr.bf16.mxu0 0
        %645 = vmatpush1.bf16.msra.mxu0 %v625
        %646 = vmatprep.subr.bf16.mxu0 0
        %647 = vmatpush1.bf16.msra.mxu0 %v626
        %648 = vmatprep.subr.bf16.mxu0 0
        %649 = vmatpush1.bf16.msra.mxu0 %v627
        %650 = vmatprep.subr.bf16.mxu0 0
        %651 = vmatpush1.bf16.msra.mxu0 %v628
        %652 = vmatprep.subr.bf16.mxu0 0
        %653 = vmatpush1.bf16.msra.mxu0 %v629
        %654 = vmatprep.subr.bf16.mxu0 0
        %655 = vmatpush1.bf16.msra.mxu0 0
        %656 = vmatprep.subr.bf16.mxu0 0
        %657 = vmatpush1.bf16.msra.mxu0 0
        %658 = vmatprep.subr.bf16.mxu0 0
        %659 = vmatpush1.bf16.msra.mxu0 0
        %660 = vmatprep.subr.bf16.mxu0 0
        %661 = vmatpush1.bf16.msra.mxu0 0
        %662 = vmatprep.subr.bf16.mxu0 0
        %663 = vmatpush1.bf16.msra.mxu0 0
        %664 = vmatprep.subr.bf16.mxu0 0
        %665 = vmatpush1.bf16.msra.mxu0 0
        %666 = vmatprep.subr.bf16.mxu0 0
        %667 = vmatpush1.bf16.msra.mxu0 0
        %668 = vmatprep.subr.bf16.mxu0 0
        %669 = vmatpush1.bf16.msra.mxu0 0
        %670 = vmatprep.mubr.bf16.mxu0 0
        %671 = vmatmul.mubr.bf16.gmra.mrb[0].mxu0 %v572
        %v672 = vpop.f32.mrb[0].mxu0
        %v673 = vadd.f32 0.0, %v672
        %v674 = vpop.f32.mrb[0].mxu0
        %v675 = vpop.f32.mrb[0].mxu0
        %v676 = vpop.f32.mrb[0].mxu0
        %677 = vdwg.mxu0
        %v678 = vadd.f32 %v566, %v673
        %v679 = vld [vmem:[%s3] sm:$0x1]
        %v681 = vlaneseq
        %v682 = vshrl.u32 %v681, 7
        %v683 = vsub.s32 0, %v682
        %v684 = vrot.slane %v679, %v683
        %v686 = vadd.f32 %v678, %v684
        %687 = vadd.xlane.f32.xlu0 %v686
        %v688 = vpop.xlane.xlu0 %687
        %v689 = vrot.slane %v688, 4
        %v690 = vadd.f32 %v688, %v689
        %v691 = vrot.slane %v690, 2
        %v692 = vadd.f32 %v690, %v691
        %v693 = vrot.slane %v692, 1
        %v694 = vadd.f32 %v692, %v693
        %s695 = vtos %v694
        %v696 = vstv %s695
        %v697 = vmul.f32 %v696, 0.0009765625
        %v698 = vsub.f32 %v686, %v697
        %v699 = vmul.f32 %v698, %v698
        %700 = vadd.xlane.f32.xlu0 %v699
        %v701 = vpop.xlane.xlu0 %700
        %v702 = vrot.slane %v701, 4
        %v703 = vadd.f32 %v701, %v702
        %v704 = vrot.slane %v703, 2
        %v705 = vadd.f32 %v703, %v704
        %v706 = vrot.slane %v705, 1
        %v707 = vadd.f32 %v705, %v706
        %s708 = vtos %v707
        %v709 = vstv %s708
        %v710 = vmul.f32 %v709, 0.0009765625
        %v711 = vadd.f32 %v710, 1e-05
        %v712 = vrsqrt.pop %v711
        %v713 = vmul.f32 %v698, %v712
        %v714 = vld [vmem:[%s4] sm:$0xff]
        %v715 = vmul.f32 %v713, %v714
        %v716 = vld [vmem:[%s5] sm:$0xff]
        %v717 = vadd.f32 %v715, %v716
        %v718 = vxor.u32 %v717, 2147483648
        %v719 = vmul.f32 %v718, 1.442695
        %v720 = vpow.pop %v719
        %v721 = vadd.f32 %v720, 1.0
        %v722 = vrcp.pop %v721
        %v723 = vmul.f32 1.0, %v722
        %v724 = vmul.f32 %v717, %v723
        %725 = vrot.lane.b32.xlu0 %v724, 64
        %v726 = vpop.permute.xlu0 %725
        %727 = vst [vmem:[#allocation2] sm:$0x1] %v726
        %728 = vst [vmem:[#allocation2 + $0x1] sm:$0xff] %v724
        %729 = vst [vmem:[#allocation2 + $0x2] sm:$0x80] %v726
        %v730 = vld [vmem:[#allocation2] sm:$0xff]
        %v731 = vpack.c.bf16 %v730, %v730
        %v732 = vld [vmem:[#allocation9] sm:$0xf]
        %v733 = vld [vmem:[#allocation9 + $0x4] sm:$0xf]
        %v734 = vld [vmem:[#allocation9 + $0x8] sm:$0xf]
        %v735 = vld [vmem:[#allocation9 + $0xc] sm:$0xf]
        %v736 = vld [vmem:[#allocation9 + $0x10] sm:$0xf]
        %v737 = vld [vmem:[#allocation9 + $0x14] sm:$0xf]
        %v738 = vld [vmem:[#allocation9 + $0x18] sm:$0xf]
        %v739 = vld [vmem:[#allocation9 + $0x1c] sm:$0xf]
        %v740 = vld [vmem:[#allocation9 + $0x20] sm:$0xf]
        %v741 = vld [vmem:[#allocation9 + $0x24] sm:$0xf]
        %v742 = vld [vmem:[#allocation9 + $0x28] sm:$0xf]
        %v743 = vld [vmem:[#allocation9 + $0x2c] sm:$0xf]
        %v744 = vld [vmem:[#allocation9 + $0x30] sm:$0xf]
        %v745 = vld [vmem:[#allocation9 + $0x34] sm:$0xf]
        %v746 = vld [vmem:[#allocation9 + $0x38] sm:$0xf]
        %v747 = vld [vmem:[#allocation9 + $0x3c] sm:$0xf]
        %v748 = vld [vmem:[#allocation2 + $0x1] sm:$0xff]
        %v749 = vpack.c.bf16 %v748, %v748
        %s750 = scalar_lea.vmem [#allocation9], 64
        %v751 = vld [vmem:[%s750] sm:$0xf]
        %v752 = vld [vmem:[%s750 + $0x4] sm:$0xf]
        %v753 = vld [vmem:[%s750 + $0x8] sm:$0xf]
        %v754 = vld [vmem:[%s750 + $0xc] sm:$0xf]
        %v755 = vld [vmem:[%s750 + $0x10] sm:$0xf]
        %v756 = vld [vmem:[%s750 + $0x14] sm:$0xf]
        %v757 = vld [vmem:[%s750 + $0x18] sm:$0xf]
        %v758 = vld [vmem:[%s750 + $0x1c] sm:$0xf]
        %v759 = vld [vmem:[%s750 + $0x20] sm:$0xf]
        %v760 = vld [vmem:[%s750 + $0x24] sm:$0xf]
        %v761 = vld [vmem:[%s750 + $0x28] sm:$0xf]
        %v762 = vld [vmem:[%s750 + $0x2c] sm:$0xf]
        %v763 = vld [vmem:[%s750 + $0x30] sm:$0xf]
        %v764 = vld [vmem:[%s750 + $0x34] sm:$0xf]
        %v765 = vld [vmem:[%s750 + $0x38] sm:$0xf]
        %v766 = vld [vmem:[%s750 + $0x3c] sm:$0xf]
        %v783 = vunpack.c.l.b16 %v751
        %v784 = vunpack.c.l.b16 %v752
        %v785 = vunpack.c.l.b16 %v753
        %v786 = vunpack.c.l.b16 %v754
        %v787 = vunpack.c.l.b16 %v755
        %v788 = vunpack.c.l.b16 %v756
        %v789 = vunpack.c.l.b16 %v757
        %v790 = vunpack.c.l.b16 %v758
        %v791 = vunpack.c.l.b16 %v759
        %v792 = vunpack.c.l.b16 %v760
        %v793 = vunpack.c.l.b16 %v761
        %v794 = vunpack.c.l.b16 %v762
        %v795 = vunpack.c.l.b16 %v763
        %v796 = vunpack.c.l.b16 %v764
        %v797 = vunpack.c.l.b16 %v765
        %v798 = vunpack.c.l.b16 %v766
        %v799 = vpack.c.b16 %v784, %v783
        %v800 = vpack.c.b16 %v786, %v785
        %v801 = vpack.c.b16 %v788, %v787
        %v802 = vpack.c.b16 %v790, %v789
        %v803 = vpack.c.b16 %v792, %v791
        %v804 = vpack.c.b16 %v794, %v793
        %v805 = vpack.c.b16 %v796, %v795
        %v806 = vpack.c.b16 %v798, %v797
        %815 = vmatprep.subr.bf16.mxu0 0
        %816 = vmatpush1.bf16.msra.mxu0 %v799
        %817 = vmatprep.subr.bf16.mxu0 0
        %818 = vmatpush1.bf16.msra.mxu0 %v800
        %819 = vmatprep.subr.bf16.mxu0 0
        %820 = vmatpush1.bf16.msra.mxu0 %v801
        %821 = vmatprep.subr.bf16.mxu0 0
        %822 = vmatpush1.bf16.msra.mxu0 %v802
        %823 = vmatprep.subr.bf16.mxu0 0
        %824 = vmatpush1.bf16.msra.mxu0 %v803
        %825 = vmatprep.subr.bf16.mxu0 0
        %826 = vmatpush1.bf16.msra.mxu0 %v804
        %827 = vmatprep.subr.bf16.mxu0 0
        %828 = vmatpush1.bf16.msra.mxu0 %v805
        %829 = vmatprep.subr.bf16.mxu0 0
        %830 = vmatpush1.bf16.msra.mxu0 %v806
        %831 = vmatprep.subr.bf16.mxu0 0
        %832 = vmatpush1.bf16.msra.mxu0 0
        %833 = vmatprep.subr.bf16.mxu0 0
        %834 = vmatpush1.bf16.msra.mxu0 0
        %835 = vmatprep.subr.bf16.mxu0 0
        %836 = vmatpush1.bf16.msra.mxu0 0
        %837 = vmatprep.subr.bf16.mxu0 0
        %838 = vmatpush1.bf16.msra.mxu0 0
        %839 = vmatprep.subr.bf16.mxu0 0
        %840 = vmatpush1.bf16.msra.mxu0 0
        %841 = vmatprep.subr.bf16.mxu0 0
        %842 = vmatpush1.bf16.msra.mxu0 0
        %843 = vmatprep.subr.bf16.mxu0 0
        %844 = vmatpush1.bf16.msra.mxu0 0
        %845 = vmatprep.subr.bf16.mxu0 0
        %846 = vmatpush1.bf16.msra.mxu0 0
        %847 = vmatprep.mubr.bf16.mxu0 0
        %848 = vmatmul.mubr.bf16.gmra.mrb[0].mxu0 %v749
        %v849 = vpop.f32.mrb[0].mxu0
        %v850 = vadd.f32 0.0, %v849
        %v851 = vpop.f32.mrb[0].mxu0
        %v852 = vpop.f32.mrb[0].mxu0
        %v853 = vpop.f32.mrb[0].mxu0
        %854 = vdwg.mxu0
        %v871 = vunpack.c.l.b16 %v732
        %v872 = vunpack.c.l.b16 %v733
        %v873 = vunpack.c.l.b16 %v734
        %v874 = vunpack.c.l.b16 %v735
        %v875 = vunpack.c.l.b16 %v736
        %v876 = vunpack.c.l.b16 %v737
        %v877 = vunpack.c.l.b16 %v738
        %v878 = vunpack.c.l.b16 %v739
        %v879 = vunpack.c.l.b16 %v740
        %v880 = vunpack.c.l.b16 %v741
        %v881 = vunpack.c.l.b16 %v742
        %v882 = vunpack.c.l.b16 %v743
        %v883 = vunpack.c.l.b16 %v744
        %v884 = vunpack.c.l.b16 %v745
        %v885 = vunpack.c.l.b16 %v746
        %v886 = vunpack.c.l.b16 %v747
        %v887 = vpack.c.b16 %v872, %v871
        %v888 = vpack.c.b16 %v874, %v873
        %v889 = vpack.c.b16 %v876, %v875
        %v890 = vpack.c.b16 %v878, %v877
        %v891 = vpack.c.b16 %v880, %v879
        %v892 = vpack.c.b16 %v882, %v881
        %v893 = vpack.c.b16 %v884, %v883
        %v894 = vpack.c.b16 %v886, %v885
        %903 = vmatprep.subr.bf16.mxu0 0
        %904 = vmatpush1.bf16.msra.mxu0 %v887
        %905 = vmatprep.subr.bf16.mxu0 0
        %906 = vmatpush1.bf16.msra.mxu0 %v888
        %907 = vmatprep.subr.bf16.mxu0 0
        %908 = vmatpush1.bf16.msra.mxu0 %v889
        %909 = vmatprep.subr.bf16.mxu0 0
        %910 = vmatpush1.bf16.msra.mxu0 %v890
        %911 = vmatprep.subr.bf16.mxu0 0
        %912 = vmatpush1.bf16.msra.mxu0 %v891
        %913 = vmatprep.subr.bf16.mxu0 0
        %914 = vmatpush1.bf16.msra.mxu0 %v892
        %915 = vmatprep.subr.bf16.mxu0 0
        %916 = vmatpush1.bf16.msra.mxu0 %v893
        %917 = vmatprep.subr.bf16.mxu0 0
        %918 = vmatpush1.bf16.msra.mxu0 %v894
        %919 = vmatprep.subr.bf16.mxu0 0
        %920 = vmatpush1.bf16.msra.mxu0 0
        %921 = vmatprep.subr.bf16.mxu0 0
        %922 = vmatpush1.bf16.msra.mxu0 0
        %923 = vmatprep.subr.bf16.mxu0 0
        %924 = vmatpush1.bf16.msra.mxu0 0
        %925 = vmatprep.subr.bf16.mxu0 0
        %926 = vmatpush1.bf16.msra.mxu0 0
        %927 = vmatprep.subr.bf16.mxu0 0
        %928 = vmatpush1.bf16.msra.mxu0 0
        %929 = vmatprep.subr.bf16.mxu0 0
        %930 = vmatpush1.bf16.msra.mxu0 0
        %931 = vmatprep.subr.bf16.mxu0 0
        %932 = vmatpush1.bf16.msra.mxu0 0
        %933 = vmatprep.subr.bf16.mxu0 0
        %934 = vmatpush1.bf16.msra.mxu0 0
        %935 = vmatprep.mubr.bf16.mxu0 0
        %936 = vmatmul.mubr.bf16.gmra.mrb[0].mxu0 %v731
        %v937 = vpop.f32.mrb[0].mxu0
        %v938 = vadd.f32 %v850, %v937
        %v939 = vpop.f32.mrb[0].mxu0
        %v940 = vpop.f32.mrb[0].mxu0
        %v941 = vpop.f32.mrb[0].mxu0
        %942 = vdwg.mxu0
        %v943 = vld [vmem:[#allocation2 + $0x2] sm:$0xff]
        %v944 = vpack.c.bf16 %v943, %v943
        %s945 = scalar_lea.vmem [#allocation9], 128
        %v946 = vld [vmem:[%s945] sm:$0xf]
        %v947 = vld [vmem:[%s945 + $0x4] sm:$0xf]
        %v948 = vld [vmem:[%s945 + $0x8] sm:$0xf]
        %v949 = vld [vmem:[%s945 + $0xc] sm:$0xf]
        %v950 = vld [vmem:[%s945 + $0x10] sm:$0xf]
        %v951 = vld [vmem:[%s945 + $0x14] sm:$0xf]
        %v952 = vld [vmem:[%s945 + $0x18] sm:$0xf]
        %v953 = vld [vmem:[%s945 + $0x1c] sm:$0xf]
        %v954 = vld [vmem:[%s945 + $0x20] sm:$0xf]
        %v955 = vld [vmem:[%s945 + $0x24] sm:$0xf]
        %v956 = vld [vmem:[%s945 + $0x28] sm:$0xf]
        %v957 = vld [vmem:[%s945 + $0x2c] sm:$0xf]
        %v958 = vld [vmem:[%s945 + $0x30] sm:$0xf]
        %v959 = vld [vmem:[%s945 + $0x34] sm:$0xf]
        %v960 = vld [vmem:[%s945 + $0x38] sm:$0xf]
        %v961 = vld [vmem:[%s945 + $0x3c] sm:$0xf]
        %v978 = vunpack.c.l.b16 %v946
        %v979 = vunpack.c.l.b16 %v947
        %v980 = vunpack.c.l.b16 %v948
        %v981 = vunpack.c.l.b16 %v949
        %v982 = vunpack.c.l.b16 %v950
        %v983 = vunpack.c.l.b16 %v951
        %v984 = vunpack.c.l.b16 %v952
        %v985 = vunpack.c.l.b16 %v953
        %v986 = vunpack.c.l.b16 %v954
        %v987 = vunpack.c.l.b16 %v955
        %v988 = vunpack.c.l.b16 %v956
        %v989 = vunpack.c.l.b16 %v957
        %v990 = vunpack.c.l.b16 %v958
        %v991 = vunpack.c.l.b16 %v959
        %v992 = vunpack.c.l.b16 %v960
        %v993 = vunpack.c.l.b16 %v961
        %v994 = vpack.c.b16 %v979, %v978
        %v995 = vpack.c.b16 %v981, %v980
        %v996 = vpack.c.b16 %v983, %v982
        %v997 = vpack.c.b16 %v985, %v984
        %v998 = vpack.c.b16 %v987, %v986
        %v999 = vpack.c.b16 %v989, %v988
        %v1000 = vpack.c.b16 %v991, %v990
        %v1001 = vpack.c.b16 %v993, %v992
        %1010 = vmatprep.subr.bf16.mxu0 0
        %1011 = vmatpush1.bf16.msra.mxu0 %v994
        %1012 = vmatprep.subr.bf16.mxu0 0
        %1013 = vmatpush1.bf16.msra.mxu0 %v995
        %1014 = vmatprep.subr.bf16.mxu0 0
        %1015 = vmatpush1.bf16.msra.mxu0 %v996
        %1016 = vmatprep.subr.bf16.mxu0 0
        %1017 = vmatpush1.bf16.msra.mxu0 %v997
        %1018 = vmatprep.subr.bf16.mxu0 0
        %1019 = vmatpush1.bf16.msra.mxu0 %v998
        %1020 = vmatprep.subr.bf16.mxu0 0
        %1021 = vmatpush1.bf16.msra.mxu0 %v999
        %1022 = vmatprep.subr.bf16.mxu0 0
        %1023 = vmatpush1.bf16.msra.mxu0 %v1000
        %1024 = vmatprep.subr.bf16.mxu0 0
        %1025 = vmatpush1.bf16.msra.mxu0 %v1001
        %1026 = vmatprep.subr.bf16.mxu0 0
        %1027 = vmatpush1.bf16.msra.mxu0 0
        %1028 = vmatprep.subr.bf16.mxu0 0
        %1029 = vmatpush1.bf16.msra.mxu0 0
        %1030 = vmatprep.subr.bf16.mxu0 0
        %1031 = vmatpush1.bf16.msra.mxu0 0
        %1032 = vmatprep.subr.bf16.mxu0 0
        %1033 = vmatpush1.bf16.msra.mxu0 0
        %1034 = vmatprep.subr.bf16.mxu0 0
        %1035 = vmatpush1.bf16.msra.mxu0 0
        %1036 = vmatprep.subr.bf16.mxu0 0
        %1037 = vmatpush1.bf16.msra.mxu0 0
        %1038 = vmatprep.subr.bf16.mxu0 0
        %1039 = vmatpush1.bf16.msra.mxu0 0
        %1040 = vmatprep.subr.bf16.mxu0 0
        %1041 = vmatpush1.bf16.msra.mxu0 0
        %1042 = vmatprep.mubr.bf16.mxu0 0
        %1043 = vmatmul.mubr.bf16.gmra.mrb[0].mxu0 %v944
        %v1044 = vpop.f32.mrb[0].mxu0
        %v1045 = vadd.f32 0.0, %v1044
        %v1046 = vpop.f32.mrb[0].mxu0
        %v1047 = vpop.f32.mrb[0].mxu0
        %v1048 = vpop.f32.mrb[0].mxu0
        %1049 = vdwg.mxu0
        %v1050 = vadd.f32 %v938, %v1045
        %v1051 = vld [vmem:[%s7] sm:$0x1]
        %v1053 = vlaneseq
        %v1054 = vshrl.u32 %v1053, 7
        %v1055 = vsub.s32 0, %v1054
        %v1056 = vrot.slane %v1051, %v1055
        %v1058 = vadd.f32 %v1050, %v1056
        %v1059 = vxor.u32 %v1058, 2147483648
        %v1060 = vmul.f32 %v1059, 1.442695
        %v1061 = vpow.pop %v1060
        %v1062 = vadd.f32 %v1061, 1.0
        %v1063 = vrcp.pop %v1062
        %v1064 = vmul.f32 1.0, %v1063
        %v1065 = vmul.f32 %v1058, %v1064
        %s1066 = sld [smem:[#allocation3]]
        %v1067 = vstv %s1066
        %v1068 = vmul.f32 %v1067, %v1065
        %v1069 = vadd.f32 %v352, %v1068
        %1070 = vst [vmem:[%s350] sm:$0xff] %v1069
        %s1071 = sand.u32 %s208, 1
        %s1072 = scalar_lea.sflag [#allocation6], %s1071
        %s1073 = sand.u32 %s208, 1
        %s1074 = smul.addr %s1073, 8
        %s1075 = scalar_lea.vmem [#allocation10], %s1074
        // Predicated region
        $region65: #{tpu_custom_call.1} parent=51 // pred_check
          %p1076 = pneg %p218
        $region66: #{tpu_custom_call.1} parent=51 // pred_check_branch
          %1078 = sbr.rel (%p1076) target = $region68
        $region67: #{tpu_custom_call.1} parent=51 // pred_region
          %s1080 = ssub.s32 128, 128
          %1081 = vsyncadd %s1072, %s1080
          %s1082 = smul.addr %s27, 128
          %s1083 = scalar_lea.hbm %s8, %s1082
          %s1085 = sshll.u32 %s1075, 4
          %s1086 = int_to_ptr.vmem [resolvable:$true] %s1085
          %1088 = dma.vmem_to_hbm [thread:$0]  %s1086, 128, %s1083, %s1072
        $region68: #{tpu_custom_call.1} parent=51 // pred_fallthru
          _
      $region52: #{tpu_custom_call.1} parent=5 // pred_fallthru
        _
      %p1089 = scmp.le.s32.totalorder 2, %s22
      // Predicated region
      $region69: #{tpu_custom_call.1} parent=5 // pred_check
        %p1090 = pneg %p1089
      $region70: #{tpu_custom_call.1} parent=5 // pred_check_branch
        %1092 = sbr.rel (%p1090) target = $region72
      $region71: #{tpu_custom_call.1} parent=5 // pred_region
        %s1093 = ssub.s32 %s22, 2
        // Predicated region
        $region73: #{tpu_custom_call.1} parent=71 // pred_check
          %p1094 = pneg %p224
        $region74: #{tpu_custom_call.1} parent=71 // pred_check_branch
          %1096 = sbr.rel (%p1094) target = $region76
        $region75: #{tpu_custom_call.1} parent=71 // pred_region
          %s1097 = sand.u32 %s209, 1
          %s1098 = scalar_lea.sflag [#allocation6], %s1097
          %s1099 = sand.u32 %s209, 1
          %s1100 = smul.addr %s1099, 8
          %s1101 = scalar_lea.vmem [#allocation10], %s1100
          %1102 = dma.done %s1098, 128
        $region76: #{tpu_custom_call.1} parent=71 // pred_fallthru
          _
      $region72: #{tpu_custom_call.1} parent=5 // pred_fallthru
        _
    $region6: #{tpu_custom_call.1} parent=1 // loop_footer
      %s26 = sadd.s32 1, %s22
    $region7: #{tpu_custom_call.1} parent=1 // loop_footer_branch
      %21 = sbr.rel target = $region3
    $region8: #{tpu_custom_call.1} parent=1 // loop_exit
      _
    %1103 = vsyncpa [#allocation5], 1
    %s1104 = scalar_lea.sflag [#allocation5], 1
    %1105 = vsyncpa %s1104, 1
    %1106 = vsyncpa [#allocation8], 1
    %1107 = vsyncpa [#allocation6], 1
    %s1108 = scalar_lea.sflag [#allocation6], 1
    %1109 = vsyncpa %s1108, 1

</llo_original>
